<compile_context>
chip_gen: v7x
topology: tpu7x:2x2x1
jax: 0.10.0
libtpu: 0.0.40
codegen_flags: <defaults>
</compile_context>

<pallas_src>
import functools

import jax
import jax.numpy as jnp
from jax.experimental import pallas as pl
from jax.experimental.pallas import tpu as pltpu


def _round_up(x, m):
    return (x + m - 1) // m * m


def _cdiv(a, b):
    return -(-a // b)


def focus_conv_kernel(x_ref, w_ref, shift_ref, o_ref, rhs_ref, *, k, wr, cin, tr):
    # x_ref:     (Cin, TRH) bf16  channel-major zero-padded image rows for this
    #                             row tile, flattened over (h, w), incl. halo.
    # w_ref:     (C2p, K)   bf16  conv weight with BN scale folded, K = k*k*Cin.
    # shift_ref: (C2p, 1)   f32   BN shift (beta - mean * scale).
    # o_ref:     (C2p, TR)        output tile (channel-major, flat h*Wp + w).
    # rhs_ref:   (K, TR)    bf16  VMEM scratch: fused-K im2col RHS.

    # Build the im2col RHS once: k*k statically-shifted copies of the (already
    # bf16) slab.  Destination row blocks are Cin-aligned; every element of the
    # scratch is rewritten each step, so no init is needed.
    for kh in range(k):
        for kw in range(k):
            j = kh * k + kw
            off = kh * wr + kw
            rhs_ref[j * cin:(j + 1) * cin, :] = x_ref[:, off:off + tr]

    # Single MXU contraction over K = k*k*Cin (instead of k*k dots with K=Cin).
    acc = jnp.dot(w_ref[...], rhs_ref[...], preferred_element_type=jnp.float32)
    y = acc + shift_ref[...]                       # fused BatchNorm (eval) shift
    # SiLU; the divide goes through the EUP approx-reciprocal slot.
    sig = pl.reciprocal(1.0 + jnp.exp(-y), approx=True)
    o_ref[...] = (y * sig).astype(o_ref.dtype)


def focus_forward(x, weight, gamma, beta, running_mean, running_var, *,
                  stride=1, padding=None, eps=1e-5,
                  tile_rows=None, out_dtype=None):
    """Focus.forward: SiLU(BN(Conv2d(space_to_depth(x)))), x in NCHW."""
    N, C1, H, W = x.shape
    C2, Cin_w, kh_, kw_ = weight.shape
    assert kh_ == kw_, "square kernels only"
    k = int(kh_)
    assert Cin_w == 4 * C1, "Focus conv expects 4*c1 input channels (groups=1)"
    assert H % 2 == 0 and W % 2 == 0, "Focus needs even spatial dims"
    assert stride == 1, "only stride=1 exercised here"
    p = (k // 2) if padding is None else padding                 # autopad
    out_dtype = x.dtype if out_dtype is None else out_dtype
    out_bytes = jnp.dtype(out_dtype).itemsize

    Hf, Wf = H // 2, W // 2
    Hp, Wp = Hf + 2 * p, Wf + 2 * p
    Ho, Wo = Hp - k + 1, Wp - k + 1
    assert Ho > 0 and Wo > 0

    Cin = _round_up(Cin_w, 8)           # input channels -> sublane multiple
    C2p = _round_up(C2, 8)              # output channels are a SUBLANE dim now
    K = k * k * Cin                     # fused contraction depth

    # ---- choose TH (output rows per grid step) from a VMEM budget ----
    if tile_rows is None:
        per_row = Wp * (2 * C2p * out_bytes + 2 * Cin * 2 + K * 2 + C2p * 4)
        tile_rows = max(1, min(Ho, int((12 * 2**20) // max(per_row, 1))))
        # Ensure enough grid steps for DMA pipelining / both v7x TensorCores.
        target_steps = 8
        tile_rows = min(tile_rows, max(1, _cdiv(Ho, max(1, target_steps // max(N, 1)))))
    TH = int(min(tile_rows, Ho))
    T = _cdiv(Ho, TH)
    Ho_pad = T * TH                     # trailing garbage rows dropped on host
    TR = TH * Wp                        # output rows per tile (padded width)
    HALO = (k - 1) * Wp + (k - 1)       # extra slab rows needed by the taps
    TRH = _round_up(TR + HALO, 128)     # lane-dense tile slab length
    L = (T - 1) * TR + TRH              # padded flat slab length

    # ---- space-to-depth (Focus slicing), stays NCHW / channel-major ----
    xf = jnp.concatenate([x[:, :, ::2, ::2], x[:, :, 1::2, ::2],
                          x[:, :, ::2, 1::2], x[:, :, 1::2, 1::2]], axis=1)
    xp = jnp.pad(xf, ((0, 0), (0, 0), (p, p), (p, p)))           # (N,4C1,Hp,Wp)
    xflat = xp.astype(jnp.bfloat16).reshape(N, Cin_w, Hp * Wp)   # cast once
    xflat = jnp.pad(xflat, ((0, 0), (0, Cin - Cin_w), (0, L - Hp * Wp)))
    # Overlapping row tiles (tile + halo) prepared on the host so the kernel's
    # input block is a plain Blocked window (fully auto-pipelined DMA).
    xtiles = jnp.stack([xflat[:, :, t * TR: t * TR + TRH] for t in range(T)],
                       axis=1)                                   # (N,T,Cin,TRH)

    # ---- fold BN scale into the conv weight, build the (C2p, K) matrix ----
    scale = gamma / jnp.sqrt(running_var + eps)                  # (C2,)
    shift = beta - running_mean * scale                          # (C2,)
    wt = weight.transpose(0, 2, 3, 1)                            # (C2,k,k,Cin_w)
    wt = jnp.pad(wt, ((0, 0), (0, 0), (0, 0), (0, Cin - Cin_w)))
    wmat = (wt.reshape(C2, K) * scale[:, None]).astype(jnp.bfloat16)
    wmat = jnp.pad(wmat, ((0, C2p - C2), (0, 0)))                # (C2p, K)
    shiftp = jnp.pad(shift, (0, C2p - C2)).reshape(C2p, 1).astype(jnp.float32)

    # ---- VMEM budget computed from the block sizes (per-generation safe) ----
    xblk = Cin * TRH * 2
    oblk = C2p * TR * out_bytes
    est = (2 * xblk + 2 * oblk + K * TR * 2 + 2 * C2p * TR * 4
           + C2p * K * 2 + C2p * 4 + (1 << 20))
    vmem_limit = int(min(100 * 2**20, max(32 * 2**20, 2 * est)))

    kern = functools.partial(focus_conv_kernel, k=k, wr=Wp, cin=Cin, tr=TR)
    out = pl.pallas_call(
        kern,
        out_shape=jax.ShapeDtypeStruct((N, T, C2p, TR), out_dtype),
        grid_spec=pltpu.PrefetchScalarGridSpec(
            num_scalar_prefetch=0,
            grid=(N, T),
            in_specs=[
                pl.BlockSpec((None, None, Cin, TRH), lambda n, t: (n, t, 0, 0)),
                pl.BlockSpec((C2p, K), lambda n, t: (0, 0)),
                pl.BlockSpec((C2p, 1), lambda n, t: (0, 0)),
            ],
            out_specs=pl.BlockSpec((None, None, C2p, TR), lambda n, t: (n, t, 0, 0)),
            scratch_shapes=[pltpu.VMEM((K, TR), jnp.bfloat16)],
        ),
        compiler_params=pltpu.CompilerParams(
            dimension_semantics=("parallel", "parallel"),
            vmem_limit_bytes=vmem_limit),
    )(xtiles, wmat, shiftp)

    # Drop padded channels / rows / garbage columns; result is already NCHW
    # (channel-major), so this is one fused slice pass, not a transpose pass.
    out = out.reshape(N, T, C2p, TH, Wp).transpose(0, 2, 1, 3, 4)
    out = out.reshape(N, C2p, Ho_pad, Wp)[:, :C2, :Ho, :Wo]
    return out


def _reference(x, weight, gamma, beta, mean, var, *, padding, eps=1e-5):
    xf = jnp.concatenate([x[:, :, ::2, ::2], x[:, :, 1::2, ::2],
                          x[:, :, ::2, 1::2], x[:, :, 1::2, 1::2]], axis=1)
    y = jax.lax.conv_general_dilated(
        xf, weight, window_strides=(1, 1),
        padding=((padding, padding), (padding, padding)),
        dimension_numbers=("NCHW", "OIHW", "NCHW"),
        precision=jax.lax.Precision.HIGHEST)
    y = (y - mean[None, :, None, None]) / jnp.sqrt(var[None, :, None, None] + eps)
    y = y * gamma[None, :, None, None] + beta[None, :, None, None]
    return y * jax.nn.sigmoid(y)


if __name__ == "__main__":
    # Focus(c1=4, c2=8, k=3, s=1): conv over 4*c1=16 channels at (H/2, W/2).
    N, C1, H, W = 2, 4, 16, 16
    C2, k = 8, 3

    key = jax.random.PRNGKey(0)
    kx, kw, kg, kb, km, kv = jax.random.split(key, 6)
    x = jax.random.normal(kx, (N, C1, H, W), dtype=jnp.float32)
    weight = jax.random.normal(kw, (C2, 4 * C1, k, k), dtype=jnp.float32) * 0.1
    gamma = jax.random.normal(kg, (C2,), dtype=jnp.float32) * 0.1 + 1.0
    beta = jax.random.normal(kb, (C2,), dtype=jnp.float32) * 0.1
    running_mean = jax.random.normal(km, (C2,), dtype=jnp.float32) * 0.1
    running_var = jax.nn.softplus(jax.random.normal(kv, (C2,), dtype=jnp.float32)) + 0.5
    # BatchNorm2d is evaluated in inference mode (running statistics).

    ref = _reference(x, weight, gamma, beta, running_mean, running_var,
                     padding=k // 2)

    # Default path: auto row-tiling (multi-tile even at this size), f32 output.
    out = focus_forward(x, weight, gamma, beta, running_mean, running_var,
                        stride=1, padding=None)
    out = jax.block_until_ready(out)
    assert out.shape == (N, C2, H // 2, W // 2), out.shape
    # bf16 MXU inputs (f32 accumulation) + approx-recip SiLU -> bf16-level tol.
    err = jnp.max(jnp.abs(out - ref))
    assert jnp.allclose(out, ref, atol=4e-2, rtol=4e-2), f"mismatch: {err}"

    # Fast path: uneven row tiles (exercises the garbage-row tail) + bf16 out.
    out_bf = focus_forward(x, weight, gamma, beta, running_mean, running_var,
                           tile_rows=3, out_dtype=jnp.bfloat16)
    out_bf = jax.block_until_ready(out_bf).astype(jnp.float32)
    err_bf = jnp.max(jnp.abs(out_bf - ref))
    assert jnp.allclose(out_bf, ref, atol=8e-2, rtol=8e-2), f"mismatch: {err_bf}"

    print("KERNEL_OK")
</pallas_src>

<mosaic_0001>
module attributes {stable_mosaic.version = 11 : i64} {
  func.func @focus_conv_kernel(%arg0: i32, %arg1: i32, %arg2: memref<1x1x16x128xbf16, #tpu.memory_space<vmem>>, %arg3: memref<8x144xbf16, #tpu.memory_space<vmem>>, %arg4: memref<8x1xf32, #tpu.memory_space<vmem>>, %arg5: memref<1x1x8x20xf32, #tpu.memory_space<vmem>>, %arg6: memref<144x20xbf16, #tpu.memory_space<vmem>>) attributes {dimension_semantics = [#tpu.dimension_semantics<parallel>, #tpu.dimension_semantics<parallel>], iteration_bounds = array<i64: 2, 4>, scalar_prefetch = 0 : i64, scratch_operands = 1 : i64, tpu.core_type = #tpu.core_type<tc>, window_params = [{transform_indices = @transform_0, window_bounds = array<i64: 1, 1, 16, 128>}, {pipeline_mode = #tpu.pipeline_mode<synchronous>, transform_indices = @transform_1, window_bounds = array<i64: 8, 144>}, {pipeline_mode = #tpu.pipeline_mode<synchronous>, transform_indices = @transform_2, window_bounds = array<i64: 8, 1>}, {transform_indices = @transform_3, window_bounds = array<i64: 1, 1, 8, 20>}]} {
    %c0 = arith.constant 0 : index
    %c0_0 = arith.constant 0 : index
    %c0_1 = arith.constant 0 : index
    %c0_2 = arith.constant 0 : index
    %0 = vector.load %arg2[%c0, %c0_0, %c0_1, %c0_2] : memref<1x1x16x128xbf16, #tpu.memory_space<vmem>>, vector<1x1x16x20xbf16>
    %1 = vector.shape_cast %0 : vector<1x1x16x20xbf16> to vector<16x20xbf16>
    %c0_3 = arith.constant 0 : index
    %c0_4 = arith.constant 0 : index
    %2 = vector.load %arg6[%c0_3, %c0_4] : memref<144x20xbf16, #tpu.memory_space<vmem>>, vector<16x20xbf16>
    tpu.vector_store %arg6[%c0_3, %c0_4], %1 {strides = array<i32>} : memref<144x20xbf16, #tpu.memory_space<vmem>>, vector<16x20xbf16>,
    %c0_5 = arith.constant 0 : index
    %c0_6 = arith.constant 0 : index
    %c0_7 = arith.constant 0 : index
    %c1 = arith.constant 1 : index
    %3 = vector.load %arg2[%c0_5, %c0_6, %c0_7, %c1] : memref<1x1x16x128xbf16, #tpu.memory_space<vmem>>, vector<1x1x16x20xbf16>
    %4 = vector.shape_cast %3 : vector<1x1x16x20xbf16> to vector<16x20xbf16>
    %c16 = arith.constant 16 : index
    %c0_8 = arith.constant 0 : index
    %5 = vector.load %arg6[%c16, %c0_8] : memref<144x20xbf16, #tpu.memory_space<vmem>>, vector<16x20xbf16>
    tpu.vector_store %arg6[%c16, %c0_8], %4 {strides = array<i32>} : memref<144x20xbf16, #tpu.memory_space<vmem>>, vector<16x20xbf16>,
    %c0_9 = arith.constant 0 : index
    %c0_10 = arith.constant 0 : index
    %c0_11 = arith.constant 0 : index
    %c2 = arith.constant 2 : index
    %6 = vector.load %arg2[%c0_9, %c0_10, %c0_11, %c2] : memref<1x1x16x128xbf16, #tpu.memory_space<vmem>>, vector<1x1x16x20xbf16>
    %7 = vector.shape_cast %6 : vector<1x1x16x20xbf16> to vector<16x20xbf16>
    %c32 = arith.constant 32 : index
    %c0_12 = arith.constant 0 : index
    %8 = vector.load %arg6[%c32, %c0_12] : memref<144x20xbf16, #tpu.memory_space<vmem>>, vector<16x20xbf16>
    tpu.vector_store %arg6[%c32, %c0_12], %7 {strides = array<i32>} : memref<144x20xbf16, #tpu.memory_space<vmem>>, vector<16x20xbf16>,
    %c0_13 = arith.constant 0 : index
    %c0_14 = arith.constant 0 : index
    %c0_15 = arith.constant 0 : index
    %c10 = arith.constant 10 : index
    %9 = vector.load %arg2[%c0_13, %c0_14, %c0_15, %c10] : memref<1x1x16x128xbf16, #tpu.memory_space<vmem>>, vector<1x1x16x20xbf16>
    %10 = vector.shape_cast %9 : vector<1x1x16x20xbf16> to vector<16x20xbf16>
    %c48 = arith.constant 48 : index
    %c0_16 = arith.constant 0 : index
    %11 = vector.load %arg6[%c48, %c0_16] : memref<144x20xbf16, #tpu.memory_space<vmem>>, vector<16x20xbf16>
    tpu.vector_store %arg6[%c48, %c0_16], %10 {strides = array<i32>} : memref<144x20xbf16, #tpu.memory_space<vmem>>, vector<16x20xbf16>,
    %c0_17 = arith.constant 0 : index
    %c0_18 = arith.constant 0 : index
    %c0_19 = arith.constant 0 : index
    %c11 = arith.constant 11 : index
    %12 = vector.load %arg2[%c0_17, %c0_18, %c0_19, %c11] : memref<1x1x16x128xbf16, #tpu.memory_space<vmem>>, vector<1x1x16x20xbf16>
    %13 = vector.shape_cast %12 : vector<1x1x16x20xbf16> to vector<16x20xbf16>
    %c64 = arith.constant 64 : index
    %c0_20 = arith.constant 0 : index
    %14 = vector.load %arg6[%c64, %c0_20] : memref<144x20xbf16, #tpu.memory_space<vmem>>, vector<16x20xbf16>
    tpu.vector_store %arg6[%c64, %c0_20], %13 {strides = array<i32>} : memref<144x20xbf16, #tpu.memory_space<vmem>>, vector<16x20xbf16>,
    %c0_21 = arith.constant 0 : index
    %c0_22 = arith.constant 0 : index
    %c0_23 = arith.constant 0 : index
    %c12 = arith.constant 12 : index
    %15 = vector.load %arg2[%c0_21, %c0_22, %c0_23, %c12] : memref<1x1x16x128xbf16, #tpu.memory_space<vmem>>, vector<1x1x16x20xbf16>
    %16 = vector.shape_cast %15 : vector<1x1x16x20xbf16> to vector<16x20xbf16>
    %c80 = arith.constant 80 : index
    %c0_24 = arith.constant 0 : index
    %17 = vector.load %arg6[%c80, %c0_24] : memref<144x20xbf16, #tpu.memory_space<vmem>>, vector<16x20xbf16>
    tpu.vector_store %arg6[%c80, %c0_24], %16 {strides = array<i32>} : memref<144x20xbf16, #tpu.memory_space<vmem>>, vector<16x20xbf16>,
    %c0_25 = arith.constant 0 : index
    %c0_26 = arith.constant 0 : index
    %c0_27 = arith.constant 0 : index
    %c20 = arith.constant 20 : index
    %18 = vector.load %arg2[%c0_25, %c0_26, %c0_27, %c20] : memref<1x1x16x128xbf16, #tpu.memory_space<vmem>>, vector<1x1x16x20xbf16>
    %19 = vector.shape_cast %18 : vector<1x1x16x20xbf16> to vector<16x20xbf16>
    %c96 = arith.constant 96 : index
    %c0_28 = arith.constant 0 : index
    %20 = vector.load %arg6[%c96, %c0_28] : memref<144x20xbf16, #tpu.memory_space<vmem>>, vector<16x20xbf16>
    tpu.vector_store %arg6[%c96, %c0_28], %19 {strides = array<i32>} : memref<144x20xbf16, #tpu.memory_space<vmem>>, vector<16x20xbf16>,
    %c0_29 = arith.constant 0 : index
    %c0_30 = arith.constant 0 : index
    %c0_31 = arith.constant 0 : index
    %c21 = arith.constant 21 : index
    %21 = vector.load %arg2[%c0_29, %c0_30, %c0_31, %c21] : memref<1x1x16x128xbf16, #tpu.memory_space<vmem>>, vector<1x1x16x20xbf16>
    %22 = vector.shape_cast %21 : vector<1x1x16x20xbf16> to vector<16x20xbf16>
    %c112 = arith.constant 112 : index
    %c0_32 = arith.constant 0 : index
    %23 = vector.load %arg6[%c112, %c0_32] : memref<144x20xbf16, #tpu.memory_space<vmem>>, vector<16x20xbf16>
    tpu.vector_store %arg6[%c112, %c0_32], %22 {strides = array<i32>} : memref<144x20xbf16, #tpu.memory_space<vmem>>, vector<16x20xbf16>,
    %c0_33 = arith.constant 0 : index
    %c0_34 = arith.constant 0 : index
    %c0_35 = arith.constant 0 : index
    %c22 = arith.constant 22 : index
    %24 = vector.load %arg2[%c0_33, %c0_34, %c0_35, %c22] : memref<1x1x16x128xbf16, #tpu.memory_space<vmem>>, vector<1x1x16x20xbf16>
    %25 = vector.shape_cast %24 : vector<1x1x16x20xbf16> to vector<16x20xbf16>
    %c128 = arith.constant 128 : index
    %c0_36 = arith.constant 0 : index
    %26 = vector.load %arg6[%c128, %c0_36] : memref<144x20xbf16, #tpu.memory_space<vmem>>, vector<16x20xbf16>
    tpu.vector_store %arg6[%c128, %c0_36], %25 {strides = array<i32>} : memref<144x20xbf16, #tpu.memory_space<vmem>>, vector<16x20xbf16>,
    %c0_37 = arith.constant 0 : index
    %c0_38 = arith.constant 0 : index
    %27 = vector.load %arg3[%c0_37, %c0_38] : memref<8x144xbf16, #tpu.memory_space<vmem>>, vector<8x144xbf16>
    %c0_39 = arith.constant 0 : index
    %c0_40 = arith.constant 0 : index
    %28 = vector.load %arg6[%c0_39, %c0_40] : memref<144x20xbf16, #tpu.memory_space<vmem>>, vector<144x20xbf16>
    %cst = arith.constant dense<0.000000e+00> : vector<8x20xf32>
    %29 = tpu.matmul %27, %28, %cst {dimension_numbers = #tpu.dot_dimension_numbers<[1], [0], [0], [1], [0, 0, 1, 1], [], []>} : vector<8x144xbf16>, vector<144x20xbf16>, vector<8x20xf32> -> vector<8x20xf32>
    %c0_41 = arith.constant 0 : index
    %c0_42 = arith.constant 0 : index
    %30 = vector.load %arg4[%c0_41, %c0_42] : memref<8x1xf32, #tpu.memory_space<vmem>>, vector<8x1xf32>
    %31 = vector.broadcast %30 : vector<8x1xf32> to vector<8x20xf32>
    %32 = arith.addf %29, %31 : vector<8x20xf32>
    %cst_43 = arith.constant 0.000000e+00 : f32
    %33 = vector.broadcast %cst_43 : f32 to vector<8x20xf32>
    %34 = arith.subf %33, %32 : vector<8x20xf32>
    %35 = math.exp %34 : vector<8x20xf32>
    %cst_44 = arith.constant 1.000000e+00 : f32
    %36 = vector.broadcast %cst_44 : f32 to vector<8x20xf32>
    %37 = arith.addf %36, %35 : vector<8x20xf32>
    %38 = tpu.reciprocal %37 {approx = true} : vector<8x20xf32> -> vector<8x20xf32>
    %39 = arith.mulf %32, %38 : vector<8x20xf32>
    %c0_45 = arith.constant 0 : index
    %c0_46 = arith.constant 0 : index
    %c0_47 = arith.constant 0 : index
    %c0_48 = arith.constant 0 : index
    %40 = vector.load %arg5[%c0_45, %c0_46, %c0_47, %c0_48] : memref<1x1x8x20xf32, #tpu.memory_space<vmem>>, vector<1x1x8x20xf32>
    %41 = vector.shape_cast %40 : vector<1x1x8x20xf32> to vector<8x20xf32>
    %42 = vector.shape_cast %39 : vector<8x20xf32> to vector<1x1x8x20xf32>
    tpu.vector_store %arg5[%c0_45, %c0_46, %c0_47, %c0_48], %42 {strides = array<i32>} : memref<1x1x8x20xf32, #tpu.memory_space<vmem>>, vector<1x1x8x20xf32>,
    return
  }
  func.func @transform_0(%arg0: i32, %arg1: i32) -> (i32, i32, i32, i32) {
    %c0_i32 = arith.constant 0 : i32
    %c0_i32_0 = arith.constant 0 : i32
    %c0_i32_1 = arith.constant 0 : i32
    return %arg0, %arg1, %c0_i32, %c0_i32_0 : i32, i32, i32, i32
  }
  func.func @transform_1(%arg0: i32, %arg1: i32) -> (i32, i32) {
    %c0_i32 = arith.constant 0 : i32
    %c0_i32_0 = arith.constant 0 : i32
    %c0_i32_1 = arith.constant 0 : i32
    return %c0_i32, %c0_i32_0 : i32, i32
  }
  func.func @transform_2(%arg0: i32, %arg1: i32) -> (i32, i32) {
    %c0_i32 = arith.constant 0 : i32
    %c0_i32_0 = arith.constant 0 : i32
    %c0_i32_1 = arith.constant 0 : i32
    return %c0_i32, %c0_i32_0 : i32, i32
  }
  func.func @transform_3(%arg0: i32, %arg1: i32) -> (i32, i32, i32, i32) {
    %c0_i32 = arith.constant 0 : i32
    %c0_i32_0 = arith.constant 0 : i32
    %c0_i32_1 = arith.constant 0 : i32
    return %arg0, %arg1, %c0_i32, %c0_i32_0 : i32, i32, i32, i32
  }
}

</mosaic_0001>

<llo_original>
// kernel: tpu_custom_call.1
$region0: #{tpu_custom_call.1}
  #allocation0 [shape = 'u32[]', space=smem, size = 0x4, offset = 0x4, fixed_abs, tag = 'smem constant byte address 0x4 - core index']
  #allocation1 [shape = 'u32[144,128]{1,0:T(1,128)}', space=vmem, size = 0x12000, scoped, tag = 'internal scratch']
  #allocation2 [shape = 'bf16[144,20]{1,0:T(16,128)(2,1)}', space=vmem, size = 0x9000, scoped, tag = 'scratch operand']
  %s0 = inlined_call_operand.hbm [shape: bf16[2,4,16,128], index: 0, kind: input, shape index: {}]
  %s1 = inlined_call_operand.vmem [shape: bf16[8,144], index: 1, kind: input, shape index: {}]
  %s2 = inlined_call_operand.vmem [shape: f32[8,1], index: 2, kind: input, shape index: {}]
  %s3 = inlined_call_operand.hbm [shape: f32[2,4,8,20], index: 3, kind: output, shape index: {}]
  %s4 = sld [smem:[#allocation0]]
  $region49: #{tpu_custom_call.1} parent=0
    _
  %s6 = ssub.s32 1, %s4
  %s7 = scalar_select 0, %s6, %s4
  $region1: #{tpu_custom_call.1} parent=0
    #allocation3 [shape = 'u8[8192]{0}', space=vmem, size = 0x2000, scoped, tag = 'input window, operand 0']
    #allocation4 [shape = 's32[2]{0}', space=sflag, size = 0x8, scoped, tag = 'scoped memory for tpu_custom_call.1']
    #allocation5 [shape = 's32[2]{0}', space=sflag, size = 0x8, scoped, tag = 'scoped memory for tpu_custom_call.1']
    #allocation6 [shape = 'u8[8192]{0}', space=vmem, size = 0x2000, scoped, tag = 'output window, operand 0']
    %8 = vsyncpa [#allocation4], 0
    %s9 = scalar_lea.sflag [#allocation4], 1
    %10 = vsyncpa %s9, 0
    %11 = vsyncpa [#allocation5], 0
    %s12 = scalar_lea.sflag [#allocation5], 1
    %13 = vsyncpa %s12, 0
    loop: start=0, step=1, limit=10
    $region2: #{tpu_custom_call.1} parent=1 // loop_pre_header
      _
    $region3: #{tpu_custom_call.1} parent=1 // loop_header
      %s15 = sphi 0, %s19
      %p16 = scmp.ge.s32.totalorder %s15, 10
      %s22 = sphi 0, %s34
      %s23 = sphi 0, %s30
      %s24 = sphi 0, %s22
      %s25 = sphi 0, %s23
      %s26 = sphi 0, %s24
      %s27 = sphi 0, %s25
      %s39 = sphi 0, %s41
      %s42 = sphi 0, %s39
      %s43 = sphi 0, %s42
      %s59 = sphi 0, %s43
      %s63 = sphi 0, %s63
      %s65 = sphi 0, %s63
      %s66 = sphi 0, %s65
      %s80 = sphi 0, %s66
      %s84 = sphi 0, %s84
      %s86 = sphi 0, %s84
      %s87 = sphi 0, %s86
      %s101 = sphi 0, %s87
      %s109 = sphi 0, %s111
      %s112 = sphi 0, %s109
      %s113 = sphi 0, %s112
      %s129 = sphi 0, %s113
    $region4: #{tpu_custom_call.1} parent=1 // loop_header_branch
      %18 = sbr.rel (%p16) target = $region8
    $region5: #{tpu_custom_call.1} parent=1 // loop_body
      %s20 = ssub.s32 %s15, 1
      %s21 = ssub.s32 %s15, 2
      %s28 = sadd.s32 1, %s23
      %p29 = scmp.ge.s32.totalorder %s28, 4
      %s30 = scalar_select %p29, 0, %s28
      %s31 = sadd.s32 1, %s22
      %s32 = scalar_select %p29, %s31, %s22
      %p33 = scmp.ge.s32.totalorder %s32, 2
      %s34 = scalar_select %p33, 0, %s32
      %s35 = ssub.s32 %s22, %s34
      %s36 = ssub.s32 %s23, %s30
      %s37 = sor.u32 %s35, %s36
      %p38 = scmp.eq.s32.totalorder %s37, 0
      %s40 = sadd.s32 %s39, 1
      %s41 = scalar_select %p38, %s39, %s40
      %p44 = pneg %p38
      %p45 = scmp.eq.s32.totalorder %s15, 7
      %p46 = por %p44, %p45
      %p47 = scmp.ne.s32.totalorder %s39, %s42
      %p48 = scmp.eq.s32.totalorder %s15, 0
      %p49 = por %p47, %p48
      %p50 = scmp.ne.s32.totalorder %s39, %s42
      %p51 = scmp.eq.s32.totalorder %s20, 7
      %p52 = por %p50, %p51
      %p53 = scmp.ne.s32.totalorder %s42, %s43
      %p54 = scmp.eq.s32.totalorder %s20, 0
      %p55 = por %p53, %p54
      %p56 = scmp.ne.s32.totalorder %s42, %s43
      %p57 = scmp.eq.s32.totalorder %s21, 7
      %p58 = por %p56, %p57
      %p60 = scmp.ne.s32.totalorder %s43, %s59
      %p61 = scmp.eq.s32.totalorder %s21, 0
      %p62 = por %p60, %p61
      %s64 = sadd.s32 %s63, 1
      %p67 = scmp.eq.s32.totalorder %s15, 7
      %p68 = scmp.ne.s32.totalorder %s63, %s65
      %p69 = scmp.eq.s32.totalorder %s15, 0
      %p70 = por %p68, %p69
      %p71 = scmp.ne.s32.totalorder %s63, %s65
      %p72 = scmp.eq.s32.totalorder %s20, 7
      %p73 = por %p71, %p72
      %p74 = scmp.ne.s32.totalorder %s65, %s66
      %p75 = scmp.eq.s32.totalorder %s20, 0
      %p76 = por %p74, %p75
      %p77 = scmp.ne.s32.totalorder %s65, %s66
      %p78 = scmp.eq.s32.totalorder %s21, 7
      %p79 = por %p77, %p78
      %p81 = scmp.ne.s32.totalorder %s66, %s80
      %p82 = scmp.eq.s32.totalorder %s21, 0
      %p83 = por %p81, %p82
      %s85 = sadd.s32 %s84, 1
      %p88 = scmp.eq.s32.totalorder %s15, 7
      %p89 = scmp.ne.s32.totalorder %s84, %s86
      %p90 = scmp.eq.s32.totalorder %s15, 0
      %p91 = por %p89, %p90
      %p92 = scmp.ne.s32.totalorder %s84, %s86
      %p93 = scmp.eq.s32.totalorder %s20, 7
      %p94 = por %p92, %p93
      %p95 = scmp.ne.s32.totalorder %s86, %s87
      %p96 = scmp.eq.s32.totalorder %s20, 0
      %p97 = por %p95, %p96
      %p98 = scmp.ne.s32.totalorder %s86, %s87
      %p99 = scmp.eq.s32.totalorder %s21, 7
      %p100 = por %p98, %p99
      %p102 = scmp.ne.s32.totalorder %s87, %s101
      %p103 = scmp.eq.s32.totalorder %s21, 0
      %p104 = por %p102, %p103
      %s105 = ssub.s32 %s22, %s34
      %s106 = ssub.s32 %s23, %s30
      %s107 = sor.u32 %s105, %s106
      %p108 = scmp.eq.s32.totalorder %s107, 0
      %s110 = sadd.s32 %s109, 1
      %s111 = scalar_select %p108, %s109, %s110
      %p114 = pneg %p108
      %p115 = scmp.eq.s32.totalorder %s15, 7
      %p116 = por %p114, %p115
      %p117 = scmp.ne.s32.totalorder %s109, %s112
      %p118 = scmp.eq.s32.totalorder %s15, 0
      %p119 = por %p117, %p118
      %p120 = scmp.ne.s32.totalorder %s109, %s112
      %p121 = scmp.eq.s32.totalorder %s20, 7
      %p122 = por %p120, %p121
      %p123 = scmp.ne.s32.totalorder %s112, %s113
      %p124 = scmp.eq.s32.totalorder %s20, 0
      %p125 = por %p123, %p124
      %p126 = scmp.ne.s32.totalorder %s112, %s113
      %p127 = scmp.eq.s32.totalorder %s21, 7
      %p128 = por %p126, %p127
      %p130 = scmp.ne.s32.totalorder %s113, %s129
      %p131 = scmp.eq.s32.totalorder %s21, 0
      %p132 = por %p130, %p131
      %p133 = scmp.le.s32.totalorder 1, %s15
      %p134 = scmp.lt.s32.totalorder %s15, 9
      %p135 = pnand %p133, %p134
      %p136 = pneg %p135
      // Predicated region
      $region9: #{tpu_custom_call.1} parent=5 // pred_check
        _
      $region10: #{tpu_custom_call.1} parent=5 // pred_check_branch
        %138 = sbr.rel (%p135) target = $region12
      $region11: #{tpu_custom_call.1} parent=5 // pred_region
        %s139 = ssub.s32 %s15, 1
        // Predicated region
        $region13: #{tpu_custom_call.1} parent=11 // pred_check
          %p140 = pneg %p76
        $region14: #{tpu_custom_call.1} parent=11 // pred_check_branch
          %142 = sbr.rel (%p140) target = $region16
        $region15: #{tpu_custom_call.1} parent=11 // pred_region
          _
        $region16: #{tpu_custom_call.1} parent=11 // pred_fallthru
          _
        // Predicated region
        $region17: #{tpu_custom_call.1} parent=11 // pred_check
          %p143 = pneg %p97
        $region18: #{tpu_custom_call.1} parent=11 // pred_check_branch
          %145 = sbr.rel (%p143) target = $region20
        $region19: #{tpu_custom_call.1} parent=11 // pred_region
          _
        $region20: #{tpu_custom_call.1} parent=11 // pred_fallthru
          _
      $region12: #{tpu_custom_call.1} parent=5 // pred_fallthru
        _
      %p146 = scmp.lt.s32.totalorder %s15, 8
      // Predicated region
      $region21: #{tpu_custom_call.1} parent=5 // pred_check
        %p147 = pneg %p146
      $region22: #{tpu_custom_call.1} parent=5 // pred_check_branch
        %149 = sbr.rel (%p147) target = $region24
      $region23: #{tpu_custom_call.1} parent=5 // pred_region
        // Predicated region
        $region25: #{tpu_custom_call.1} parent=23 // pred_check
          %p150 = pneg %p49
        $region26: #{tpu_custom_call.1} parent=23 // pred_check_branch
          %152 = sbr.rel (%p150) target = $region28
        $region27: #{tpu_custom_call.1} parent=23 // pred_region
          %s153 = sand.u32 %s39, 1
          %s154 = scalar_lea.sflag [#allocation4], %s153
          %s155 = sand.u32 %s39, 1
          %s156 = smul.addr %s155, 8
          %s157 = scalar_lea.vmem [#allocation3], %s156
          %s159 = ssub.s32 128, 128
          %160 = vsyncadd %s154, %s159
          %s161 = smul.addr %s23, 2
          %s162 = smul.addr %s22, 8
          %s163 = sadd.s32 %s161, %s162
          %s164 = smul.addr %s163, 64
          %s165 = scalar_lea.hbm %s0, %s164
          %s166 = sshll.u32 %s157, 4
          %s167 = int_to_ptr.vmem [resolvable:$true] %s166
          %172 = dma.hbm_to_vmem [thread:$0]  %s165, 128, %s167, %s154, 64, 64, 4
        $region28: #{tpu_custom_call.1} parent=23 // pred_fallthru
          _
      $region24: #{tpu_custom_call.1} parent=5 // pred_fallthru
        _
      %p173 = scmp.le.s32.totalorder 1, %s15
      %p174 = scmp.lt.s32.totalorder %s15, 9
      %p175 = pnand %p173, %p174
      %p176 = pneg %p175
      // Predicated region
      $region29: #{tpu_custom_call.1} parent=5 // pred_check
        _
      $region30: #{tpu_custom_call.1} parent=5 // pred_check_branch
        %178 = sbr.rel (%p175) target = $region32
      $region31: #{tpu_custom_call.1} parent=5 // pred_region
        %s179 = ssub.s32 %s15, 1
        %s180 = sand.u32 %s42, 1
        %s181 = scalar_lea.sflag [#allocation4], %s180
        %s182 = sand.u32 %s42, 1
        %s183 = smul.addr %s182, 8
        %s184 = scalar_lea.vmem [#allocation3], %s183
        // Predicated region
        $region33: #{tpu_custom_call.1} parent=31 // pred_check
          %p185 = pneg %p55
        $region34: #{tpu_custom_call.1} parent=31 // pred_check_branch
          %187 = sbr.rel (%p185) target = $region36
        $region35: #{tpu_custom_call.1} parent=31 // pred_region
          %188 = dma.done %s181, 128
        $region36: #{tpu_custom_call.1} parent=31 // pred_fallthru
          _
        %s189 = sand.u32 %s42, 1
        %s190 = scalar_lea.sflag [#allocation4], %s189
        %s191 = sand.u32 %s42, 1
        %s192 = smul.addr %s191, 8
        %s193 = scalar_lea.vmem [#allocation3], %s192
        %p194 = pneg %p55
        %p195 = pneg %p52
        %p196 = pneg %p76
        %p197 = pneg %p73
        %p198 = pneg %p97
        %p199 = pneg %p94
        %p200 = pneg %p125
        %p201 = pneg %p122
        %s202 = sand.u32 %s112, 1
        %s203 = scalar_lea.sflag [#allocation5], %s202
        %s204 = sand.u32 %s112, 1
        %s205 = smul.addr %s204, 8
        %s206 = scalar_lea.vmem [#allocation6], %s205
        %v208 = vld [vmem:[%s184] sm:$0xf]
        %v209 = vld [vmem:[%s184 + $0x4] sm:$0xf]
        %v212 = vunpack.c.l.b16 %v208
        %v213 = vunpack.c.l.b16 %v209
        %v214 = vpack.c.b16 %v213, %v212
        %vm216 = vcmask 162816
        %217 = vst.msk [vmem:[#allocation2] sm:$0xff] %vm216, %v214
        %v218 = vld [vmem:[%s184] sm:$0xf]
        %v219 = vld [vmem:[%s184 + $0x4] sm:$0xf]
        %v222 = vunpack.c.l.b16 %v218
        %v223 = vunpack.c.l.b16 %v219
        %v224 = vpack.c.b16 %v223, %v222
        %225 = vrot.lane.b32.xlu0 %v224, 127
        %v226 = vpop.permute.xlu0 %225
        %228 = vst.msk [vmem:[#allocation2 + $0x8] sm:$0xff] %vm216, %v226
        %v229 = vld [vmem:[%s184] sm:$0xf]
        %v230 = vld [vmem:[%s184 + $0x4] sm:$0xf]
        %v233 = vunpack.c.l.b16 %v229
        %v234 = vunpack.c.l.b16 %v230
        %v235 = vpack.c.b16 %v234, %v233
        %236 = vrot.lane.b32.xlu0 %v235, 126
        %v237 = vpop.permute.xlu0 %236
        %239 = vst.msk [vmem:[#allocation2 + $0x10] sm:$0xff] %vm216, %v237
        %v240 = vld [vmem:[%s184] sm:$0xf]
        %v241 = vld [vmem:[%s184 + $0x4] sm:$0xf]
        %v244 = vunpack.c.l.b16 %v240
        %v245 = vunpack.c.l.b16 %v241
        %v246 = vpack.c.b16 %v245, %v244
        %247 = vrot.lane.b32.xlu0 %v246, 118
        %v248 = vpop.permute.xlu0 %247
        %250 = vst.msk [vmem:[#allocation2 + $0x18] sm:$0xff] %vm216, %v248
        %v251 = vld [vmem:[%s184] sm:$0xf]
        %v252 = vld [vmem:[%s184 + $0x4] sm:$0xf]
        %v255 = vunpack.c.l.b16 %v251
        %v256 = vunpack.c.l.b16 %v252
        %v257 = vpack.c.b16 %v256, %v255
        %258 = vrot.lane.b32.xlu0 %v257, 117
        %v259 = vpop.permute.xlu0 %258
        %261 = vst.msk [vmem:[#allocation2 + $0x20] sm:$0xff] %vm216, %v259
        %v262 = vld [vmem:[%s184] sm:$0xf]
        %v263 = vld [vmem:[%s184 + $0x4] sm:$0xf]
        %v266 = vunpack.c.l.b16 %v262
        %v267 = vunpack.c.l.b16 %v263
        %v268 = vpack.c.b16 %v267, %v266
        %269 = vrot.lane.b32.xlu0 %v268, 116
        %v270 = vpop.permute.xlu0 %269
        %272 = vst.msk [vmem:[#allocation2 + $0x28] sm:$0xff] %vm216, %v270
        %v273 = vld [vmem:[%s184] sm:$0xf]
        %v274 = vld [vmem:[%s184 + $0x4] sm:$0xf]
        %v277 = vunpack.c.l.b16 %v273
        %v278 = vunpack.c.l.b16 %v274
        %v279 = vpack.c.b16 %v278, %v277
        %280 = vrot.lane.b32.xlu0 %v279, 108
        %v281 = vpop.permute.xlu0 %280
        %283 = vst.msk [vmem:[#allocation2 + $0x30] sm:$0xff] %vm216, %v281
        %v284 = vld [vmem:[%s184] sm:$0xf]
        %v285 = vld [vmem:[%s184 + $0x4] sm:$0xf]
        %v288 = vunpack.c.l.b16 %v284
        %v289 = vunpack.c.l.b16 %v285
        %v290 = vpack.c.b16 %v289, %v288
        %291 = vrot.lane.b32.xlu0 %v290, 107
        %v292 = vpop.permute.xlu0 %291
        %294 = vst.msk [vmem:[#allocation2 + $0x38] sm:$0xff] %vm216, %v292
        %v295 = vld [vmem:[%s184] sm:$0xf]
        %v296 = vld [vmem:[%s184 + $0x4] sm:$0xf]
        %v299 = vunpack.c.l.b16 %v295
        %v300 = vunpack.c.l.b16 %v296
        %v301 = vpack.c.b16 %v300, %v299
        %302 = vrot.lane.b32.xlu0 %v301, 106
        %v303 = vpop.permute.xlu0 %302
        %305 = vst.msk [vmem:[#allocation2 + $0x40] sm:$0xff] %vm216, %v303
        %v306 = vld [vmem:[%s1] sm:$0xff]
        %v307 = vld [vmem:[#allocation2] sm:$0xff]
        %v308 = vld [vmem:[#allocation2 + $0x8] sm:$0xff]
        %v309 = vld [vmem:[#allocation2 + $0x10] sm:$0xff]
        %v310 = vld [vmem:[#allocation2 + $0x18] sm:$0xff]
        %v311 = vld [vmem:[#allocation2 + $0x20] sm:$0xff]
        %v312 = vld [vmem:[#allocation2 + $0x28] sm:$0xff]
        %v313 = vld [vmem:[#allocation2 + $0x30] sm:$0xff]
        %v314 = vld [vmem:[#allocation2 + $0x38] sm:$0xff]
        %v315 = vld [vmem:[#allocation2 + $0x40] sm:$0xff]
        %v316 = vld [vmem:[%s2] sm:$0xff]
        %318 = vset.pattern.permute.xlu0 0
        %319 = vperm.xlu0 %318, %v316
        %v320 = vpop.permute.xlu0 %319
        %v323 = vunpack.c.l.b16 %v306
        %v324 = vunpack.c.h.b16 %v306
        %v325 = vpack.c.b16 %v323, %v323
        %v326 = vpack.c.b16 %v324, %v324
        %vm328 = vcmask 130048
        %v330 = vsel %vm328, %v326, 0
        %332 = vmatprep.subr.bf16.mxu0 0
        %333 = vmatpush1.bf16.msra.mxu0 %v307
        %334 = vmatprep.subr.bf16.mxu0 0
        %335 = vmatpush1.bf16.msra.mxu0 %v308
        %336 = vmatprep.subr.bf16.mxu0 0
        %337 = vmatpush1.bf16.msra.mxu0 %v309
        %338 = vmatprep.subr.bf16.mxu0 0
        %339 = vmatpush1.bf16.msra.mxu0 %v310
        %340 = vmatprep.subr.bf16.mxu0 0
        %341 = vmatpush1.bf16.msra.mxu0 %v311
        %342 = vmatprep.subr.bf16.mxu0 0
        %343 = vmatpush1.bf16.msra.mxu0 %v312
        %344 = vmatprep.subr.bf16.mxu0 0
        %345 = vmatpush1.bf16.msra.mxu0 %v313
        %346 = vmatprep.subr.bf16.mxu0 0
        %347 = vmatpush1.bf16.msra.mxu0 %v314
        %348 = vmatprep.subr.bf16.mxu0 0
        %349 = vmatpush1.bf16.msra.mxu0 %v315
        %350 = vmatprep.subr.bf16.mxu0 0
        %351 = vmatpush1.bf16.msra.mxu0 0
        %352 = vmatprep.subr.bf16.mxu0 0
        %353 = vmatpush1.bf16.msra.mxu0 0
        %354 = vmatprep.subr.bf16.mxu0 0
        %355 = vmatpush1.bf16.msra.mxu0 0
        %356 = vmatprep.subr.bf16.mxu0 0
        %357 = vmatpush1.bf16.msra.mxu0 0
        %358 = vmatprep.subr.bf16.mxu0 0
        %359 = vmatpush1.bf16.msra.mxu0 0
        %360 = vmatprep.subr.bf16.mxu0 0
        %361 = vmatpush1.bf16.msra.mxu0 0
        %362 = vmatprep.subr.bf16.mxu0 0
        %363 = vmatpush1.bf16.msra.mxu0 0
        %364 = vmatprep.mubr.bf16.mxu0 %v330
        %365 = vmatmul.mubr.bf16.gmra.mrb[0].mxu0 %v325
        %v366 = vpop.f32.mrb[0].mxu0
        %v367 = vadd.f32 %v320, %v366
        %v368 = vpop.f32.mrb[0].mxu0
        %v369 = vpop.f32.mrb[0].mxu0
        %v370 = vpop.f32.mrb[0].mxu0
        %371 = vdwg.mxu0
        %v372 = vsub.f32 0.0, %v367
        %v373 = vmul.f32 %v372, 1.442695
        %v374 = vpow.pop %v373
        %v375 = vadd.f32 %v374, 1.0
        %v376 = vrcp.pop %v375
        %v377 = vmul.f32 %v367, %v376
        %378 = vst.msk [vmem:[%s206] sm:$0xff] %vm216, %v377
        %s379 = sand.u32 %s112, 1
        %s380 = scalar_lea.sflag [#allocation5], %s379
        %s381 = sand.u32 %s112, 1
        %s382 = smul.addr %s381, 8
        %s383 = scalar_lea.vmem [#allocation6], %s382
        // Predicated region
        $region37: #{tpu_custom_call.1} parent=31 // pred_check
          %p384 = pneg %p122
        $region38: #{tpu_custom_call.1} parent=31 // pred_check_branch
          %386 = sbr.rel (%p384) target = $region40
        $region39: #{tpu_custom_call.1} parent=31 // pred_region
          %s388 = ssub.s32 128, 128
          %389 = vsyncadd %s380, %s388
          %s390 = smul.addr %s24, 4
          %s391 = sadd.s32 %s25, %s390
          %s392 = smul.addr %s391, 128
          %s393 = scalar_lea.hbm %s3, %s392
          %s395 = sshll.u32 %s383, 4
          %s396 = int_to_ptr.vmem [resolvable:$true] %s395
          %398 = dma.vmem_to_hbm [thread:$0]  %s396, 128, %s393, %s380
        $region40: #{tpu_custom_call.1} parent=31 // pred_fallthru
          _
      $region32: #{tpu_custom_call.1} parent=5 // pred_fallthru
        _
      %p399 = scmp.le.s32.totalorder 2, %s15
      // Predicated region
      $region41: #{tpu_custom_call.1} parent=5 // pred_check
        %p400 = pneg %p399
      $region42: #{tpu_custom_call.1} parent=5 // pred_check_branch
        %402 = sbr.rel (%p400) target = $region44
      $region43: #{tpu_custom_call.1} parent=5 // pred_region
        %s403 = ssub.s32 %s15, 2
        // Predicated region
        $region45: #{tpu_custom_call.1} parent=43 // pred_check
          %p404 = pneg %p128
        $region46: #{tpu_custom_call.1} parent=43 // pred_check_branch
          %406 = sbr.rel (%p404) target = $region48
        $region47: #{tpu_custom_call.1} parent=43 // pred_region
          %s407 = sand.u32 %s113, 1
          %s408 = scalar_lea.sflag [#allocation5], %s407
          %s409 = sand.u32 %s113, 1
          %s410 = smul.addr %s409, 8
          %s411 = scalar_lea.vmem [#allocation6], %s410
          %412 = dma.done %s408, 128
        $region48: #{tpu_custom_call.1} parent=43 // pred_fallthru
          _
      $region44: #{tpu_custom_call.1} parent=5 // pred_fallthru
        _
    $region6: #{tpu_custom_call.1} parent=1 // loop_footer
      %s19 = sadd.s32 1, %s15
    $region7: #{tpu_custom_call.1} parent=1 // loop_footer_branch
      %14 = sbr.rel target = $region3
    $region8: #{tpu_custom_call.1} parent=1 // loop_exit
      _
    %413 = vsyncpa [#allocation4], 1
    %s414 = scalar_lea.sflag [#allocation4], 1
    %415 = vsyncpa %s414, 1
    %416 = vsyncpa [#allocation5], 1
    %s417 = scalar_lea.sflag [#allocation5], 1
    %418 = vsyncpa %s417, 1

</llo_original>
